<compile_context>
chip_gen: v7x
topology: tpu7x:2x2x1
jax: 0.10.0
libtpu: 0.0.40
codegen_flags: <defaults>
</compile_context>

<pallas_src>
import numpy as np
import jax
import jax.numpy as jnp
from jax.experimental import pallas as pl
from jax.experimental.pallas import tpu as pltpu


def _ffm_kernel(x_ref, wt_ref, o_ref):
    # x_ref:  (TM, in_dim)       VMEM (row tile of the flattened input)
    # wt_ref: (in_dim, out_dim)  VMEM (resident across all grid steps)
    # o_ref:  (TM, out_dim)      VMEM
    z = jnp.dot(x_ref[...], wt_ref[...], preferred_element_type=jnp.float32)
    o_ref[...] = jnp.sin(z).astype(o_ref.dtype)  # Sine activation, w0 = 1


def prepare_ffm_weight(weight: jax.Array) -> jax.Array:
    """Hoisted weight prep — call once per model.

    weight: (out_dim, in_dim) in PyTorch nn.Linear layout.
    Returns the transposed (in_dim, out_dim) weight the kernel consumes.
    """
    return jnp.asarray(weight).T


def _pick_row_tile(n_rows: int, block_rows: int, min_steps: int = 8) -> int:
    """Row tile: aim for >= min_steps grid steps (pipelining + v7x megacore),
    round to the 8-sublane granule, never exceed the VMEM budget cap."""
    tm = max(8, pl.cdiv(n_rows, min_steps))
    tm = min(tm, block_rows)
    return ((tm + 7) // 8) * 8


def fourier_feature_map(x: jax.Array, wt: jax.Array, *,
                        block_rows: int = 4096, out_dtype=None) -> jax.Array:
    """x: (..., in_dim). wt: (in_dim, out_dim) from prepare_ffm_weight.
    Returns sin(x @ weight.T) with shape (..., out_dim)."""
    in_dim, out_dim = wt.shape
    assert x.shape[-1] == in_dim, "last dim of x must equal in_dim"
    lead = x.shape[:-1]
    out_dtype = jnp.dtype(out_dtype or x.dtype)

    # Flatten leading dims only: layout-preserving (last two dims untouched).
    x2 = x.reshape(-1, in_dim)
    n = x2.shape[0]

    tm = _pick_row_tile(n, block_rows)
    grid = (pl.cdiv(n, tm),)

    cost = pl.CostEstimate(
        flops=2 * n * in_dim * out_dim,
        transcendentals=n * out_dim,
        bytes_accessed=(x2.size * x2.dtype.itemsize
                        + wt.size * wt.dtype.itemsize
                        + n * out_dim * out_dtype.itemsize),
    )

    out = pl.pallas_call(
        _ffm_kernel,
        out_shape=jax.ShapeDtypeStruct((n, out_dim), out_dtype),
        grid_spec=pltpu.PrefetchScalarGridSpec(
            num_scalar_prefetch=0,
            grid=grid,
            in_specs=[
                pl.BlockSpec((tm, in_dim), lambda i: (i, 0)),       # tiled rows
                pl.BlockSpec((in_dim, out_dim), lambda i: (0, 0)),  # resident weight
            ],
            out_specs=pl.BlockSpec((tm, out_dim), lambda i: (i, 0)),
        ),
        compiler_params=pltpu.CompilerParams(
            dimension_semantics=("parallel",),  # shard row tiles across v7x TCs
        ),
        cost_estimate=cost,
    )(x2, wt)

    # Restore leading dims only — layout-preserving, no relayout copy.
    return out.reshape(*lead, out_dim)


def init_ffm_weight(key: jax.Array, in_dim: int, out_dim: int) -> jax.Array:
    """Re-implementation of the PyTorch __init__ weight init:
      rand_dirs = 2*U[0,1) - 1, shape (out_dim, in_dim)
      rand_dirs = linspace(0.5, 4, out_dim)[:, None] * rand_dirs / ||rand_dirs||_row
    """
    rand_dirs = 2.0 * jax.random.uniform(key, (out_dim, in_dim), jnp.float32) - 1.0
    norms = jnp.linalg.norm(rand_dirs, axis=1, keepdims=True)
    scales = jnp.linspace(0.5, 4.0, out_dim)[:, None]
    return (scales * (rand_dirs / norms)).astype(jnp.float32)


if __name__ == "__main__":
    key = jax.random.PRNGKey(0)
    k_x, k_w, k_x2 = jax.random.split(key, 3)

    in_dim, out_dim = 4, 32
    weight = init_ffm_weight(k_w, in_dim, out_dim)      # PyTorch (out_dim, in_dim)
    wt = prepare_ffm_weight(weight)                      # hoisted: once per model

    # --- small batch consistent with the module (coords -> fourier features)
    x = jax.random.normal(k_x, (16, in_dim), dtype=jnp.float32)
    out = jax.block_until_ready(fourier_feature_map(x, wt))
    ref = jnp.sin(x @ weight.T)
    np.testing.assert_allclose(np.asarray(out), np.asarray(ref), rtol=1e-5, atol=1e-5)

    # --- leading batch dims + multi-step pipelined grid (256 rows -> 8 steps)
    x2 = jax.random.normal(k_x2, (2, 128, in_dim), dtype=jnp.float32)
    out2 = jax.block_until_ready(fourier_feature_map(x2, wt))
    ref2 = jnp.sin(jnp.einsum("...i,oi->...o", x2, weight))
    np.testing.assert_allclose(np.asarray(out2), np.asarray(ref2), rtol=1e-5, atol=1e-5)

    print("KERNEL_OK")
</pallas_src>

<mosaic_0001>
module attributes {stable_mosaic.version = 11 : i64} {
  func.func @_ffm_kernel(%arg0: i32, %arg1: memref<8x4xf32, #tpu.memory_space<vmem>>, %arg2: memref<4x32xf32, #tpu.memory_space<vmem>>, %arg3: memref<8x32xf32, #tpu.memory_space<vmem>>) attributes {dimension_semantics = [#tpu.dimension_semantics<parallel>], iteration_bounds = array<i64: 2>, scalar_prefetch = 0 : i64, scratch_operands = 0 : i64, tpu.core_type = #tpu.core_type<tc>, window_params = [{transform_indices = @transform_0, window_bounds = array<i64: 8, 4>}, {pipeline_mode = #tpu.pipeline_mode<synchronous>, transform_indices = @transform_1, window_bounds = array<i64: 4, 32>}, {transform_indices = @transform_2, window_bounds = array<i64: 8, 32>}]} {
    %c0 = arith.constant 0 : index
    %c0_0 = arith.constant 0 : index
    %0 = vector.load %arg1[%c0, %c0_0] : memref<8x4xf32, #tpu.memory_space<vmem>>, vector<8x4xf32>
    %c0_1 = arith.constant 0 : index
    %c0_2 = arith.constant 0 : index
    %1 = vector.load %arg2[%c0_1, %c0_2] : memref<4x32xf32, #tpu.memory_space<vmem>>, vector<4x32xf32>
    %cst = arith.constant dense<0.000000e+00> : vector<8x32xf32>
    %2 = tpu.matmul %0, %1, %cst {dimension_numbers = #tpu.dot_dimension_numbers<[1], [0], [0], [1], [0, 0, 1, 1], [], []>} : vector<8x4xf32>, vector<4x32xf32>, vector<8x32xf32> -> vector<8x32xf32>
    %3 = math.sin %2 : vector<8x32xf32>
    %c0_3 = arith.constant 0 : index
    %c0_4 = arith.constant 0 : index
    %4 = vector.load %arg3[%c0_3, %c0_4] : memref<8x32xf32, #tpu.memory_space<vmem>>, vector<8x32xf32>
    tpu.vector_store %arg3[%c0_3, %c0_4], %3 {strides = array<i32>} : memref<8x32xf32, #tpu.memory_space<vmem>>, vector<8x32xf32>,
    return
  }
  func.func @transform_0(%arg0: i32) -> (i32, i32) {
    %c0_i32 = arith.constant 0 : i32
    %c0_i32_0 = arith.constant 0 : i32
    return %arg0, %c0_i32 : i32, i32
  }
  func.func @transform_1(%arg0: i32) -> (i32, i32) {
    %c0_i32 = arith.constant 0 : i32
    %c0_i32_0 = arith.constant 0 : i32
    %c0_i32_1 = arith.constant 0 : i32
    return %c0_i32, %c0_i32_0 : i32, i32
  }
  func.func @transform_2(%arg0: i32) -> (i32, i32) {
    %c0_i32 = arith.constant 0 : i32
    %c0_i32_0 = arith.constant 0 : i32
    return %arg0, %c0_i32 : i32, i32
  }
}

</mosaic_0001>

<llo_original>
// kernel: tpu_custom_call.1
$region0: #{tpu_custom_call.1}
  #allocation0 [shape = 'u32[]', space=smem, size = 0x4, offset = 0x4, fixed_abs, tag = 'smem constant byte address 0x4 - core index']
  #allocation1 [shape = 'u32[144,128]{1,0:T(1,128)}', space=vmem, size = 0x12000, scoped, tag = 'internal scratch']
  %s0 = inlined_call_operand.vmem [shape: f32[16,4], index: 0, kind: input, shape index: {}]
  %s1 = inlined_call_operand.vmem [shape: f32[4,32], index: 1, kind: input, shape index: {}]
  %s2 = inlined_call_operand.hbm [shape: f32[16,32], index: 2, kind: output, shape index: {}]
  %s3 = sld [smem:[#allocation0]]
  $region41: #{tpu_custom_call.1} parent=0
    _
  %s5 = ssub.s32 1, %s3
  %s6 = scalar_select 0, %s5, %s3
  $region1: #{tpu_custom_call.1} parent=0
    #allocation2 [shape = 'u8[8192]{0}', space=vmem, size = 0x2000, scoped, tag = 'output window, operand 0']
    #allocation3 [shape = 's32[2]{0}', space=sflag, size = 0x8, scoped, tag = 'scoped memory for tpu_custom_call.1']
    %7 = vsyncpa [#allocation3], 0
    %s8 = scalar_lea.sflag [#allocation3], 1
    %9 = vsyncpa %s8, 0
    loop: start=0, step=1, limit=4
    $region2: #{tpu_custom_call.1} parent=1 // loop_pre_header
      _
    $region3: #{tpu_custom_call.1} parent=1 // loop_header
      %s11 = sphi 0, %s15
      %p12 = scmp.ge.s32.totalorder %s11, 4
      %s21 = sphi 0, %s23
      %s24 = sphi 0, %s21
      %s25 = sphi 0, %s24
      %s41 = sphi 0, %s25
      %s45 = sphi 0, %s45
      %s47 = sphi 0, %s45
      %s48 = sphi 0, %s47
      %s62 = sphi 0, %s48
      %s68 = sphi 0, %s70
      %s71 = sphi 0, %s68
      %s72 = sphi 0, %s71
      %s88 = sphi 0, %s72
    $region4: #{tpu_custom_call.1} parent=1 // loop_header_branch
      %14 = sbr.rel (%p12) target = $region8
    $region5: #{tpu_custom_call.1} parent=1 // loop_body
      %s16 = ssub.s32 %s11, 1
      %s17 = ssub.s32 %s11, 2
      %s18 = sadd.s32 %s11, 1
      %s19 = ssub.s32 %s11, %s18
      %p20 = scmp.eq.s32.totalorder %s19, 0
      %s22 = sadd.s32 %s21, 1
      %s23 = scalar_select %p20, %s21, %s22
      %p26 = pneg %p20
      %p27 = scmp.eq.s32.totalorder %s11, 1
      %p28 = por %p26, %p27
      %p29 = scmp.ne.s32.totalorder %s21, %s24
      %p30 = scmp.eq.s32.totalorder %s11, 0
      %p31 = por %p29, %p30
      %p32 = scmp.ne.s32.totalorder %s21, %s24
      %p33 = scmp.eq.s32.totalorder %s16, 1
      %p34 = por %p32, %p33
      %p35 = scmp.ne.s32.totalorder %s24, %s25
      %p36 = scmp.eq.s32.totalorder %s16, 0
      %p37 = por %p35, %p36
      %p38 = scmp.ne.s32.totalorder %s24, %s25
      %p39 = scmp.eq.s32.totalorder %s17, 1
      %p40 = por %p38, %p39
      %p42 = scmp.ne.s32.totalorder %s25, %s41
      %p43 = scmp.eq.s32.totalorder %s17, 0
      %p44 = por %p42, %p43
      %s46 = sadd.s32 %s45, 1
      %p49 = scmp.eq.s32.totalorder %s11, 1
      %p50 = scmp.ne.s32.totalorder %s45, %s47
      %p51 = scmp.eq.s32.totalorder %s11, 0
      %p52 = por %p50, %p51
      %p53 = scmp.ne.s32.totalorder %s45, %s47
      %p54 = scmp.eq.s32.totalorder %s16, 1
      %p55 = por %p53, %p54
      %p56 = scmp.ne.s32.totalorder %s47, %s48
      %p57 = scmp.eq.s32.totalorder %s16, 0
      %p58 = por %p56, %p57
      %p59 = scmp.ne.s32.totalorder %s47, %s48
      %p60 = scmp.eq.s32.totalorder %s17, 1
      %p61 = por %p59, %p60
      %p63 = scmp.ne.s32.totalorder %s48, %s62
      %p64 = scmp.eq.s32.totalorder %s17, 0
      %p65 = por %p63, %p64
      %s66 = ssub.s32 %s11, %s18
      %p67 = scmp.eq.s32.totalorder %s66, 0
      %s69 = sadd.s32 %s68, 1
      %s70 = scalar_select %p67, %s68, %s69
      %p73 = pneg %p67
      %p74 = scmp.eq.s32.totalorder %s11, 1
      %p75 = por %p73, %p74
      %p76 = scmp.ne.s32.totalorder %s68, %s71
      %p77 = scmp.eq.s32.totalorder %s11, 0
      %p78 = por %p76, %p77
      %p79 = scmp.ne.s32.totalorder %s68, %s71
      %p80 = scmp.eq.s32.totalorder %s16, 1
      %p81 = por %p79, %p80
      %p82 = scmp.ne.s32.totalorder %s71, %s72
      %p83 = scmp.eq.s32.totalorder %s16, 0
      %p84 = por %p82, %p83
      %p85 = scmp.ne.s32.totalorder %s71, %s72
      %p86 = scmp.eq.s32.totalorder %s17, 1
      %p87 = por %p85, %p86
      %p89 = scmp.ne.s32.totalorder %s72, %s88
      %p90 = scmp.eq.s32.totalorder %s17, 0
      %p91 = por %p89, %p90
      %p92 = scmp.le.s32.totalorder 1, %s11
      %p93 = scmp.lt.s32.totalorder %s11, 3
      %p94 = pnand %p92, %p93
      %p95 = pneg %p94
      // Predicated region
      $region9: #{tpu_custom_call.1} parent=5 // pred_check
        _
      $region10: #{tpu_custom_call.1} parent=5 // pred_check_branch
        %97 = sbr.rel (%p94) target = $region12
      $region11: #{tpu_custom_call.1} parent=5 // pred_region
        %s98 = ssub.s32 %s11, 1
        // Predicated region
        $region13: #{tpu_custom_call.1} parent=11 // pred_check
          %p99 = pneg %p58
        $region14: #{tpu_custom_call.1} parent=11 // pred_check_branch
          %101 = sbr.rel (%p99) target = $region16
        $region15: #{tpu_custom_call.1} parent=11 // pred_region
          _
        $region16: #{tpu_custom_call.1} parent=11 // pred_fallthru
          _
      $region12: #{tpu_custom_call.1} parent=5 // pred_fallthru
        _
      %p102 = scmp.lt.s32.totalorder %s11, 2
      // Predicated region
      $region17: #{tpu_custom_call.1} parent=5 // pred_check
        %p103 = pneg %p102
      $region18: #{tpu_custom_call.1} parent=5 // pred_check_branch
        %105 = sbr.rel (%p103) target = $region20
      $region19: #{tpu_custom_call.1} parent=5 // pred_region
        // Predicated region
        $region21: #{tpu_custom_call.1} parent=19 // pred_check
          %p106 = pneg %p31
        $region22: #{tpu_custom_call.1} parent=19 // pred_check_branch
          %108 = sbr.rel (%p106) target = $region24
        $region23: #{tpu_custom_call.1} parent=19 // pred_region
          %p109 = scmp.lt.s32.totalorder %s11, 1
          %s110 = scalar_select %p109, %s11, 1
          %s111 = smul.addr %s110, 8
          %s112 = scalar_lea.vmem %s0, %s111
        $region24: #{tpu_custom_call.1} parent=19 // pred_fallthru
          _
      $region20: #{tpu_custom_call.1} parent=5 // pred_fallthru
        _
      %p113 = scmp.le.s32.totalorder 1, %s11
      %p114 = scmp.lt.s32.totalorder %s11, 3
      %p115 = pnand %p113, %p114
      %p116 = pneg %p115
      // Predicated region
      $region25: #{tpu_custom_call.1} parent=5 // pred_check
        _
      $region26: #{tpu_custom_call.1} parent=5 // pred_check_branch
        %118 = sbr.rel (%p115) target = $region28
      $region27: #{tpu_custom_call.1} parent=5 // pred_region
        %s119 = ssub.s32 %s11, 1
        %p120 = scmp.lt.s32.totalorder %s16, 1
        %s121 = scalar_select %p120, %s16, 1
        %s122 = smul.addr %s121, 8
        %s123 = scalar_lea.vmem %s0, %s122
        %p124 = pneg %p37
        %p125 = pneg %p34
        %p126 = pneg %p58
        %p127 = pneg %p55
        %p128 = pneg %p84
        %p129 = pneg %p81
        %s130 = sand.u32 %s71, 1
        %s131 = scalar_lea.sflag [#allocation3], %s130
        %s132 = sand.u32 %s71, 1
        %s133 = smul.addr %s132, 8
        %s134 = scalar_lea.vmem [#allocation2], %s133
        %p135 = scmp.lt.s32.totalorder %s16, 1
        %s136 = scalar_select %p135, %s16, 1
        %s137 = smul.addr %s136, 8
        %s138 = scalar_lea.vmem %s0, %s137
        %v139 = vld [vmem:[%s138] sm:$0xff]
        %v140 = vld [vmem:[%s1] sm:$0xf]
        %vm141 = vcmask 31744
        %v143 = vsel %vm141, %v139, 0
        %vm145 = vcmask 1043456
        %v147 = vsel %vm145, %v140, 0
        %149 = vmatprep.subr.mxu0 0.0
        %150 = vmatpush1.msra.mxu0 %v147
        %151 = vmatprep.subr.mxu0 0.0
        %152 = vmatpush1.msra.mxu0 0.0
        %153 = vmatprep.subr.mxu0 0.0
        %154 = vmatpush1.msra.mxu0 0.0
        %155 = vmatprep.subr.mxu0 0.0
        %156 = vmatpush1.msra.mxu0 0.0
        %157 = vmatprep.subr.mxu0 0.0
        %158 = vmatpush1.msra.mxu0 0.0
        %159 = vmatprep.subr.mxu0 0.0
        %160 = vmatpush1.msra.mxu0 0.0
        %161 = vmatprep.subr.mxu0 0.0
        %162 = vmatpush1.msra.mxu0 0.0
        %163 = vmatprep.subr.mxu0 0.0
        %164 = vmatpush1.msra.mxu0 0.0
        %165 = vmatprep.subr.mxu0 0.0
        %166 = vmatpush1.msra.mxu0 0.0
        %167 = vmatprep.subr.mxu0 0.0
        %168 = vmatpush1.msra.mxu0 0.0
        %169 = vmatprep.subr.mxu0 0.0
        %170 = vmatpush1.msra.mxu0 0.0
        %171 = vmatprep.subr.mxu0 0.0
        %172 = vmatpush1.msra.mxu0 0.0
        %173 = vmatprep.subr.mxu0 0.0
        %174 = vmatpush1.msra.mxu0 0.0
        %175 = vmatprep.subr.mxu0 0.0
        %176 = vmatpush1.msra.mxu0 0.0
        %177 = vmatprep.subr.mxu0 0.0
        %178 = vmatpush1.msra.mxu0 0.0
        %179 = vmatprep.subr.mxu0 0.0
        %180 = vmatpush1.msra.mxu0 0.0
        %181 = vmatprep.subr.mxu0 0.0
        %182 = vmatpush1.msra.mxu0 0.0
        %183 = vmatprep.subr.mxu0 0.0
        %184 = vmatpush1.msra.mxu0 0.0
        %185 = vmatprep.subr.mxu0 0.0
        %186 = vmatpush1.msra.mxu0 0.0
        %187 = vmatprep.subr.mxu0 0.0
        %188 = vmatpush1.msra.mxu0 0.0
        %189 = vmatprep.subr.mxu0 0.0
        %190 = vmatpush1.msra.mxu0 0.0
        %191 = vmatprep.subr.mxu0 0.0
        %192 = vmatpush1.msra.mxu0 0.0
        %193 = vmatprep.subr.mxu0 0.0
        %194 = vmatpush1.msra.mxu0 0.0
        %195 = vmatprep.subr.mxu0 0.0
        %196 = vmatpush1.msra.mxu0 0.0
        %197 = vmatprep.subr.mxu0 0.0
        %198 = vmatpush1.msra.mxu0 0.0
        %199 = vmatprep.subr.mxu0 0.0
        %200 = vmatpush1.msra.mxu0 0.0
        %201 = vmatprep.subr.mxu0 0.0
        %202 = vmatpush1.msra.mxu0 0.0
        %203 = vmatprep.subr.mxu0 0.0
        %204 = vmatpush1.msra.mxu0 0.0
        %205 = vmatprep.subr.mxu0 0.0
        %206 = vmatpush1.msra.mxu0 0.0
        %207 = vmatprep.subr.mxu0 0.0
        %208 = vmatpush1.msra.mxu0 0.0
        %209 = vmatprep.subr.mxu0 0.0
        %210 = vmatpush1.msra.mxu0 0.0
        %211 = vmatprep.subr.mxu0 0.0
        %212 = vmatpush1.msra.mxu0 0.0
        %213 = vmatprep.mubr.f32.mxu0 0.0
        %214 = vmatmul.mubr.f32.gmra.mrb[0].mxu0 %v143
        %v215 = vpop.f32.mrb[0].mxu0
        %v216 = vadd.f32 0.0, %v215
        %v217 = vpop.f32.mrb[0].mxu0
        %218 = vdwg.mxu0
        %v219 = vand.u32 2147483647, %v216
        %vm220 = vcmp.le.f32.partialorder %v219, 0.7853982
        %vm221 = vcmp.lt.s32.totalorder %v216, 0
        %v222 = vand.u32 %v216, 2139095040
        %v223 = vshrl.u32 %v222, 23
        %v224 = vsub.s32 %v223, 127
        %v225 = vand.u32 2147483647, %v216
        %v226 = vand.u32 %v225, 8388607
        %v227 = vor.u32 %v226, 8388608
        %v228 = vsub.s32 0, %v227
        %v229 = vadd.s32 %v224, 1
        %vm230 = vcmp.gt.s32.totalorder %v229, 0
        %v231 = vsel %vm230, %v229, 0
        %v232 = vshrl.u32 %v231, 5
        %v233 = vand.u32 %v231, 31
        %v234 = vsub.s32 32, %v233
        %v235 = vshrl.u32 683565275, %v234
        %v236 = vshll.u32 683565275, %v233
        %v237 = vshrl.u32 2475754826, %v234
        %v238 = vor.u32 %v236, %v237
        %v239 = vshll.u32 2475754826, %v233
        %v240 = vshrl.u32 2131351028, %v234
        %v241 = vor.u32 %v239, %v240
        %v242 = vshll.u32 2131351028, %v233
        %v243 = vshrl.u32 2102212464, %v234
        %v244 = vor.u32 %v242, %v243
        %v245 = vshll.u32 2102212464, %v233
        %v246 = vshrl.u32 920167782, %v234
        %v247 = vor.u32 %v245, %v246
        %v248 = vshll.u32 920167782, %v233
        %v249 = vshrl.u32 1326507024, %v234
        %v250 = vor.u32 %v248, %v249
        %vm251 = vcmp.lt.s32.totalorder %v232, 1
        %vm252 = vcmp.lt.s32.totalorder %v232, 2
        %vm253 = vcmp.lt.s32.totalorder %v232, 3
        %vm254 = vcmp.lt.s32.totalorder %v232, 4
        %v255 = vsel %vm251, %v235, %v238
        %v256 = vsel %vm254, %v244, 2102212464
        %v257 = vsel %vm253, %v241, %v256
        %v258 = vsel %vm252, %v255, %v257
        %v259 = vsel %vm251, %v238, %v241
        %v260 = vsel %vm254, %v247, 920167782
        %v261 = vsel %vm253, %v244, %v260
        %v262 = vsel %vm252, %v259, %v261
        %v263 = vsel %vm251, %v241, %v244
        %v264 = vsel %vm254, %v250, 1326507024
        %v265 = vsel %vm253, %v247, %v264
        %v266 = vsel %vm252, %v263, %v265
        %v267 = vshll.u32 %v227, 8
        %v268 = vmul.u32.u64.compose %v267, %v266
        %v269 = vextract.low.u32 %v268
        %v270 = vextract.high.u32 %v268
        %v271 = vmul.u32.u64.compose %v267, %v262
        %v272 = vextract.low.u32 %v271
        %v273 = vextract.high.u32 %v271
        %v274 = vmul.u32 %v267, %v258
        %v275 = vadd.s32 %v270, %v272
        %vm276 = vc.u32 %v270, %v272
        %v277 = vadd.s32 %v273, 1
        %v278 = vsel %vm276, %v277, %v273
        %v279 = vadd.s32 %v274, %v278
        %v280 = vadd.s32 %v279, 536870912
        %v281 = vshrl.u32 %v280, 30
        %v282 = vshll.u32 %v281, 30
        %v283 = vsub.s32 %v279, %v282
        %vm284 = vcmp.lt.s32.totalorder %v283, 0
        %v285 = vsub.s32 0, %v283
        %v286 = vsel %vm284, %v285, %v283
        %v287 = vclz %v286
        %v288 = vsub.s32 %v287, 2
        %vm289 = vcmp.gt.s32.totalorder 0, %v288
        %v290 = vsel %vm289, 0, %v288
        %v291 = vsub.s32 32, %v290
        %v292 = vshll.u32 %v283, %v290
        %v293 = vshrl.u32 %v275, %v291
        %v294 = vor.u32 %v292, %v293
        %v295 = vsub.s32 4294967266, %v290
        %v296 = vadd.s32 %v295, 127
        %v297 = vshll.u32 %v296, 23
        %v298 = vor.u32 4788187, %v297
        %v299 = vand.u32 2147483647, %v298
        %v301 = vcvt.s32.f32 %v294
        %v302 = vmul.f32 %v301, %v299
        %v303 = vxor.u32 %v302, 2147483648
        %v304 = vsel %vm221, %v303, %v302
        %v305 = vsub.s32 4, %v281
        %v306 = vsel %vm221, %v305, %v281
        %v307 = vsel %vm220, %v216, %v304
        %v308 = vsel %vm220, 0, %v306
        %v309 = vcosq.f32.pop %v307
        %v310 = vsinq.f32.pop %v307
        %vm311 = vweird.f32 %v216
        %v312 = vadd.s32 %v308, 3
        %v313 = vand.u32 %v312, 3
        %vm314 = vcmp.lt.s32.totalorder %v313, 2
        %vm315 = vcmp.eq.s32.totalorder %v313, 0
        %v316 = vxor.u32 %v310, 2147483648
        %v317 = vsel %vm315, %v309, %v316
        %vm318 = vcmp.eq.s32.totalorder %v313, 2
        %v319 = vxor.u32 %v309, 2147483648
        %v320 = vsel %vm318, %v319, %v310
        %v321 = vsel %vm314, %v317, %v320
        %v322 = vsel %vm311, nan, %v321
        %vm323 = vcmask 261120
        %324 = vst.msk [vmem:[%s134] sm:$0xff] %vm323, %v322
        %s325 = sand.u32 %s71, 1
        %s326 = scalar_lea.sflag [#allocation3], %s325
        %s327 = sand.u32 %s71, 1
        %s328 = smul.addr %s327, 8
        %s329 = scalar_lea.vmem [#allocation2], %s328
        // Predicated region
        $region29: #{tpu_custom_call.1} parent=27 // pred_check
          %p330 = pneg %p81
        $region30: #{tpu_custom_call.1} parent=27 // pred_check_branch
          %332 = sbr.rel (%p330) target = $region32
        $region31: #{tpu_custom_call.1} parent=27 // pred_region
          %s334 = ssub.s32 128, 128
          %335 = vsyncadd %s326, %s334
          %s336 = smul.addr %s16, 128
          %s337 = scalar_lea.hbm %s2, %s336
          %s339 = sshll.u32 %s329, 4
          %s340 = int_to_ptr.vmem [resolvable:$true] %s339
          %342 = dma.vmem_to_hbm [thread:$0]  %s340, 128, %s337, %s326
        $region32: #{tpu_custom_call.1} parent=27 // pred_fallthru
          _
      $region28: #{tpu_custom_call.1} parent=5 // pred_fallthru
        _
      %p343 = scmp.le.s32.totalorder 2, %s11
      // Predicated region
      $region33: #{tpu_custom_call.1} parent=5 // pred_check
        %p344 = pneg %p343
      $region34: #{tpu_custom_call.1} parent=5 // pred_check_branch
        %346 = sbr.rel (%p344) target = $region36
      $region35: #{tpu_custom_call.1} parent=5 // pred_region
        %s347 = ssub.s32 %s11, 2
        // Predicated region
        $region37: #{tpu_custom_call.1} parent=35 // pred_check
          %p348 = pneg %p87
        $region38: #{tpu_custom_call.1} parent=35 // pred_check_branch
          %350 = sbr.rel (%p348) target = $region40
        $region39: #{tpu_custom_call.1} parent=35 // pred_region
          %s351 = sand.u32 %s72, 1
          %s352 = scalar_lea.sflag [#allocation3], %s351
          %s353 = sand.u32 %s72, 1
          %s354 = smul.addr %s353, 8
          %s355 = scalar_lea.vmem [#allocation2], %s354
          %356 = dma.done %s352, 128
        $region40: #{tpu_custom_call.1} parent=35 // pred_fallthru
          _
      $region36: #{tpu_custom_call.1} parent=5 // pred_fallthru
        _
    $region6: #{tpu_custom_call.1} parent=1 // loop_footer
      %s15 = sadd.s32 1, %s11
    $region7: #{tpu_custom_call.1} parent=1 // loop_footer_branch
      %10 = sbr.rel target = $region3
    $region8: #{tpu_custom_call.1} parent=1 // loop_exit
      _
    %357 = vsyncpa [#allocation3], 1
    %s358 = scalar_lea.sflag [#allocation3], 1
    %359 = vsyncpa %s358, 1

</llo_original>
